<compile_context>
chip_gen: v6e
topology: v6e:2x2x1
jax: 0.10.0
libtpu: 0.0.40
codegen_flags: <defaults>
</compile_context>

<pallas_src>
import functools

import jax
import jax.numpy as jnp
from jax.experimental import pallas as pl
from jax.experimental.pallas import tpu as pltpu

HID_SIZE = 64
LANE = 128                      # TPU lane width; feature dims padded to this
_W_ROWS = 3 * LANE              # bf16 weight slab: rows 0..383 = w1, w2, w3
_B_ROWS = 8                     # f32 bias block: rows 0..2 = b1, b2, b3 (+pad)


def _round_up(a, m):
    return (a + m - 1) // m * m


def _actor_mlp_kernel(x_ref, w_ref, b_ref, out_ref, *, obs_size):
    """One batch tile of the 3-layer tanh MLP (lane-dense, bf16 MXU, f32 acc)."""
    x = x_ref[...]                                       # (tb, obs_size) f32
    if obs_size < LANE:                                  # static python branch
        x = jnp.pad(x, ((0, 0), (0, LANE - obs_size)))   # lane-dense (tb, 128)
    x = x.astype(jnp.bfloat16)

    # Weights are already bf16 in the slab -> no per-step casts.
    w1 = w_ref[0 * LANE:1 * LANE, :]
    w2 = w_ref[1 * LANE:2 * LANE, :]
    w3 = w_ref[2 * LANE:3 * LANE, :]

    bias = b_ref[...]                                    # (8, 128) f32
    b1 = bias[0:1, :]
    b2 = bias[1:2, :]
    b3 = bias[2:3, :]

    h1 = jnp.tanh(jnp.dot(x, w1, preferred_element_type=jnp.float32) + b1)
    h2 = jnp.tanh(jnp.dot(h1.astype(jnp.bfloat16), w2,
                          preferred_element_type=jnp.float32) + b2)
    h3 = jnp.tanh(jnp.dot(h2.astype(jnp.bfloat16), w3,
                          preferred_element_type=jnp.float32) + b3)

    out_ref[...] = h3.astype(out_ref.dtype)


def pack_actor_params(params):
    """Pack params once: bf16 weight slab (384,128) + f32 bias block (8,128)."""
    obs_size = params["w1"].shape[0]
    act_size = params["w3"].shape[1]
    assert obs_size <= LANE, f"obs_size={obs_size} > {LANE} not supported"
    assert HID_SIZE <= LANE, f"HID_SIZE={HID_SIZE} > {LANE} not supported"
    assert act_size <= LANE, f"act_size={act_size} > {LANE} not supported"

    def pad_w(w):
        out = jnp.zeros((LANE, LANE), jnp.float32)
        return out.at[:w.shape[0], :w.shape[1]].set(jnp.asarray(w, jnp.float32))

    def pad_b(b):
        b = jnp.asarray(b, jnp.float32).reshape(1, -1)
        out = jnp.zeros((1, LANE), jnp.float32)
        return out.at[:, :b.shape[1]].set(b)

    w_slab = jnp.concatenate(
        [pad_w(params["w1"]), pad_w(params["w2"]), pad_w(params["w3"])],
        axis=0).astype(jnp.bfloat16)                     # (384, 128) bf16
    bias_block = jnp.concatenate(
        [pad_b(params["b1"]), pad_b(params["b2"]), pad_b(params["b3"]),
         jnp.zeros((_B_ROWS - 3, LANE), jnp.float32)],
        axis=0)                                          # (8, 128) f32
    assert w_slab.shape == (_W_ROWS, LANE)
    assert bias_block.shape == (_B_ROWS, LANE)
    return w_slab, bias_block


def actor_forward(x, w_slab, bias_block, *, act_size, tile_batch=2048,
                  out_dtype=jnp.bfloat16):
    """x: (batch, obs_size) f32; (w_slab, bias_block) = pack_actor_params(...)."""
    batch, obs_size = x.shape
    assert obs_size <= LANE

    # Batch tile: multiple of 8 sublanes, capped at tile_batch for big batches.
    tb = min(_round_up(tile_batch, 8), _round_up(max(batch, 1), 8))
    padded_batch = _round_up(batch, tb)
    if padded_batch != batch:
        x = jnp.pad(x, ((0, padded_batch - batch), (0, 0)))

    grid = (padded_batch // tb,)
    kernel = functools.partial(_actor_mlp_kernel, obs_size=obs_size)

    out_pad = pl.pallas_call(
        kernel,
        out_shape=jax.ShapeDtypeStruct((padded_batch, LANE), out_dtype),
        grid_spec=pltpu.PrefetchScalarGridSpec(
            num_scalar_prefetch=0,
            grid=grid,
            in_specs=[
                # x block: last dim == full array extent (obs_size), contiguous DMA.
                pl.BlockSpec((tb, obs_size), lambda i: (i, 0)),
                # Resident bf16 weight slab (constant index_map across steps).
                pl.BlockSpec((_W_ROWS, LANE), lambda i: (0, 0)),
                # Resident tiny f32 bias block.
                pl.BlockSpec((_B_ROWS, LANE), lambda i: (0, 0)),
            ],
            out_specs=pl.BlockSpec((tb, LANE), lambda i: (i, 0)),
        ),
        # TODO(synk): on v7x, CORE_PARALLEL on the batch axis (grid >= 2 steps)
        # would shard the rollout batch across both TensorCores.
        compiler_params=pltpu.CompilerParams(
            dimension_semantics=(pltpu.PARALLEL,)),
    )(x, w_slab, bias_block)

    # Callers should run this whole function under jit so the trailing slice
    # fuses with downstream consumers instead of being a standalone dispatch.
    return out_pad[:batch, :act_size]


def init_model_actor_params(key, obs_size, act_size):
    """Deterministic init mimicking nn.Linear's U(-1/sqrt(fan_in), 1/sqrt(fan_in))."""
    ks = jax.random.split(key, 6)

    def linear(kw, kb, fan_in, fan_out):
        bound = 1.0 / jnp.sqrt(jnp.float32(fan_in))
        w = jax.random.uniform(kw, (fan_in, fan_out), jnp.float32, -bound, bound)
        b = jax.random.uniform(kb, (1, fan_out), jnp.float32, -bound, bound)
        return w, b

    w1, b1 = linear(ks[0], ks[1], obs_size, HID_SIZE)
    w2, b2 = linear(ks[2], ks[3], HID_SIZE, HID_SIZE)
    w3, b3 = linear(ks[4], ks[5], HID_SIZE, act_size)
    # logstd parameter exists on the module but is not used by forward().
    logstd = jnp.zeros((act_size,), jnp.float32)
    return {"w1": w1, "b1": b1, "w2": w2, "b2": b2, "w3": w3, "b3": b3,
            "logstd": logstd}


def reference_forward(x, p):
    h = jnp.tanh(x @ p["w1"] + p["b1"])
    h = jnp.tanh(h @ p["w2"] + p["b2"])
    return jnp.tanh(h @ p["w3"] + p["b3"])


if __name__ == "__main__":
    # HalfCheetah(PyBullet)-like sizes, kept small: obs_size=26, act_size=6.
    OBS_SIZE, ACT_SIZE, BATCH = 26, 6, 8

    key = jax.random.PRNGKey(0)
    k_params, k_x = jax.random.split(key)
    params = init_model_actor_params(k_params, OBS_SIZE, ACT_SIZE)
    w_slab, bias_block = pack_actor_params(params)   # pack/pad once, reuse
    x = jax.random.normal(k_x, (BATCH, OBS_SIZE), jnp.float32)

    # One jit around pad + pallas_call + slice = one dispatch on the latency path.
    fwd = jax.jit(actor_forward,
                  static_argnames=("act_size", "tile_batch", "out_dtype"))
    out = fwd(x, w_slab, bias_block, act_size=ACT_SIZE)
    out = jax.block_until_ready(out)

    ref = reference_forward(x, params)
    assert out.shape == (BATCH, ACT_SIZE)
    assert out.dtype == jnp.bfloat16
    # bf16 MXU operands + bf16 output -> looser tolerance (values are tanh-bounded).
    assert jnp.allclose(out.astype(jnp.float32), ref, atol=3e-2, rtol=0.0), \
        "mismatch vs reference"

    print("KERNEL_OK")
</pallas_src>

<mosaic_0001>
module attributes {stable_mosaic.version = 11 : i64} {
  func.func @_actor_mlp_kernel(%arg0: i32, %arg1: memref<8x26xf32, #tpu.memory_space<vmem>>, %arg2: memref<384x128xbf16, #tpu.memory_space<vmem>>, %arg3: memref<8x128xf32, #tpu.memory_space<vmem>>, %arg4: memref<8x128xbf16, #tpu.memory_space<vmem>>) attributes {dimension_semantics = [#tpu.dimension_semantics<parallel>], iteration_bounds = array<i64: 1>, scalar_prefetch = 0 : i64, scratch_operands = 0 : i64, tpu.core_type = #tpu.core_type<tc>, window_params = [{transform_indices = @transform_0, window_bounds = array<i64: 8, 26>}, {pipeline_mode = #tpu.pipeline_mode<synchronous>, transform_indices = @transform_1, window_bounds = array<i64: 384, 128>}, {pipeline_mode = #tpu.pipeline_mode<synchronous>, transform_indices = @transform_2, window_bounds = array<i64: 8, 128>}, {transform_indices = @transform_3, window_bounds = array<i64: 8, 128>}]} {
    %c0 = arith.constant 0 : index
    %c0_0 = arith.constant 0 : index
    %0 = vector.load %arg1[%c0, %c0_0] : memref<8x26xf32, #tpu.memory_space<vmem>>, vector<8x26xf32>
    %c0_i32 = arith.constant 0 : i32
    %1 = arith.sitofp %c0_i32 : i32 to f32
    %2 = vector.broadcast %1 : f32 to vector<8x102xf32>
    %3 = tpu.concatenate %0, %2 in 1 : vector<8x26xf32>, vector<8x102xf32> -> vector<8x128xf32>
    %4 = arith.truncf %3 : vector<8x128xf32> to vector<8x128xbf16>
    %c0_1 = arith.constant 0 : index
    %c0_2 = arith.constant 0 : index
    %5 = vector.load %arg2[%c0_1, %c0_2] : memref<384x128xbf16, #tpu.memory_space<vmem>>, vector<128x128xbf16>
    %c128 = arith.constant 128 : index
    %c0_3 = arith.constant 0 : index
    %6 = vector.load %arg2[%c128, %c0_3] : memref<384x128xbf16, #tpu.memory_space<vmem>>, vector<128x128xbf16>
    %c256 = arith.constant 256 : index
    %c0_4 = arith.constant 0 : index
    %7 = vector.load %arg2[%c256, %c0_4] : memref<384x128xbf16, #tpu.memory_space<vmem>>, vector<128x128xbf16>
    %c0_5 = arith.constant 0 : index
    %c0_6 = arith.constant 0 : index
    %8 = vector.load %arg3[%c0_5, %c0_6] : memref<8x128xf32, #tpu.memory_space<vmem>>, vector<8x128xf32>
    %9 = vector.extract_strided_slice %8 {offsets = [0, 0], sizes = [1, 128], strides = [1, 1]} : vector<8x128xf32> to vector<1x128xf32>
    %10 = vector.extract_strided_slice %8 {offsets = [1, 0], sizes = [1, 128], strides = [1, 1]} : vector<8x128xf32> to vector<1x128xf32>
    %11 = vector.extract_strided_slice %8 {offsets = [2, 0], sizes = [1, 128], strides = [1, 1]} : vector<8x128xf32> to vector<1x128xf32>
    %cst = arith.constant dense<0.000000e+00> : vector<8x128xf32>
    %12 = tpu.matmul %4, %5, %cst {dimension_numbers = #tpu.dot_dimension_numbers<[1], [0], [0], [1], [0, 0, 1, 1], [], []>} : vector<8x128xbf16>, vector<128x128xbf16>, vector<8x128xf32> -> vector<8x128xf32>
    %13 = vector.broadcast %9 : vector<1x128xf32> to vector<8x128xf32>
    %14 = arith.addf %12, %13 : vector<8x128xf32>
    %15 = math.tanh %14 : vector<8x128xf32>
    %16 = arith.truncf %15 : vector<8x128xf32> to vector<8x128xbf16>
    %cst_7 = arith.constant dense<0.000000e+00> : vector<8x128xf32>
    %17 = tpu.matmul %16, %6, %cst_7 {dimension_numbers = #tpu.dot_dimension_numbers<[1], [0], [0], [1], [0, 0, 1, 1], [], []>} : vector<8x128xbf16>, vector<128x128xbf16>, vector<8x128xf32> -> vector<8x128xf32>
    %18 = vector.broadcast %10 : vector<1x128xf32> to vector<8x128xf32>
    %19 = arith.addf %17, %18 : vector<8x128xf32>
    %20 = math.tanh %19 : vector<8x128xf32>
    %21 = arith.truncf %20 : vector<8x128xf32> to vector<8x128xbf16>
    %cst_8 = arith.constant dense<0.000000e+00> : vector<8x128xf32>
    %22 = tpu.matmul %21, %7, %cst_8 {dimension_numbers = #tpu.dot_dimension_numbers<[1], [0], [0], [1], [0, 0, 1, 1], [], []>} : vector<8x128xbf16>, vector<128x128xbf16>, vector<8x128xf32> -> vector<8x128xf32>
    %23 = vector.broadcast %11 : vector<1x128xf32> to vector<8x128xf32>
    %24 = arith.addf %22, %23 : vector<8x128xf32>
    %25 = math.tanh %24 : vector<8x128xf32>
    %26 = arith.truncf %25 : vector<8x128xf32> to vector<8x128xbf16>
    %c0_9 = arith.constant 0 : index
    %c0_10 = arith.constant 0 : index
    %27 = vector.load %arg4[%c0_9, %c0_10] : memref<8x128xbf16, #tpu.memory_space<vmem>>, vector<8x128xbf16>
    tpu.vector_store %arg4[%c0_9, %c0_10], %26 {strides = array<i32>} : memref<8x128xbf16, #tpu.memory_space<vmem>>, vector<8x128xbf16>,
    return
  }
  func.func @transform_0(%arg0: i32) -> (i32, i32) {
    %c0_i32 = arith.constant 0 : i32
    %c0_i32_0 = arith.constant 0 : i32
    return %arg0, %c0_i32 : i32, i32
  }
  func.func @transform_1(%arg0: i32) -> (i32, i32) {
    %c0_i32 = arith.constant 0 : i32
    %c0_i32_0 = arith.constant 0 : i32
    %c0_i32_1 = arith.constant 0 : i32
    return %c0_i32, %c0_i32_0 : i32, i32
  }
  func.func @transform_2(%arg0: i32) -> (i32, i32) {
    %c0_i32 = arith.constant 0 : i32
    %c0_i32_0 = arith.constant 0 : i32
    %c0_i32_1 = arith.constant 0 : i32
    return %c0_i32, %c0_i32_0 : i32, i32
  }
  func.func @transform_3(%arg0: i32) -> (i32, i32) {
    %c0_i32 = arith.constant 0 : i32
    %c0_i32_0 = arith.constant 0 : i32
    return %arg0, %c0_i32 : i32, i32
  }
}

</mosaic_0001>

<llo_original>
// kernel: actor_forward.1
$region0: #{actor_forward.1}
  #allocation0 [shape = 'u32[]', space=smem, size = 0x4, offset = 0x4, fixed_abs, tag = 'smem constant byte address 0x4 - core index']
  #allocation1 [shape = 'u32[144,128]{1,0:T(1,128)}', space=vmem, size = 0x12000, scoped, tag = 'internal scratch']
  %s0 = inlined_call_operand.hbm [shape: f32[8,26], index: 0, kind: input, shape index: {}]
  %s1 = inlined_call_operand.hbm [shape: bf16[384,128], index: 1, kind: input, shape index: {}]
  %s2 = inlined_call_operand.hbm [shape: f32[8,128], index: 2, kind: input, shape index: {}]
  %s3 = inlined_call_operand.hbm [shape: bf16[8,128], index: 3, kind: output, shape index: {}]
  %s4 = sld [smem:[#allocation0]]
  $region34: #{actor_forward.1} parent=0
    _
  %s6 = ssub.s32 1, %s4
  %s7 = scalar_select 0, %s6, %s4
  $region1: #{actor_forward.1} parent=0
    #allocation2 [shape = 'u8[4096]{0}', space=vmem, size = 0x1000, scoped, tag = 'input window, operand 0, single buffered']
    #allocation3 [shape = 's32[1]{0}', space=sflag, size = 0x4, scoped, tag = 'scoped memory for actor_forward.1']
    #allocation4 [shape = 's32[1]{0}', space=sflag, size = 0x4, scoped, tag = 'scoped memory for actor_forward.1']
    #allocation5 [shape = 'u8[98304]{0}', space=vmem, size = 0x18000, scoped, tag = 'input window, operand 1, single buffered']
    #allocation6 [shape = 's32[1]{0}', space=sflag, size = 0x4, scoped, tag = 'scoped memory for actor_forward.1']
    #allocation7 [shape = 'u8[4096]{0}', space=vmem, size = 0x1000, scoped, tag = 'input window, operand 2, single buffered']
    #allocation8 [shape = 'u8[2048]{0}', space=vmem, size = 0x800, scoped, tag = 'output window, operand 0, single buffered']
    %8 = vsyncpa [#allocation3], 0
    %9 = vsyncpa [#allocation6], 0
    %10 = vsyncpa [#allocation4], 0
    // Predicated region
    $region2: #{actor_forward.1} parent=1 // pred_check
      _
    $region3: #{actor_forward.1} parent=1 // pred_check_branch
      %12 = sbr.rel (0) target = $region5
    $region4: #{actor_forward.1} parent=1 // pred_region
      %s14 = ssub.s32 128, 128
      %15 = vsyncadd [#allocation3], %s14
      %s17 = sshll.u32 [#allocation2], 4
      %s18 = int_to_ptr.vmem [resolvable:$true] %s17
      %20 = dma.hbm_to_vmem [thread:$0]  %s0, 128, %s18, [#allocation3]
    $region5: #{actor_forward.1} parent=1 // pred_fallthru
      _
    // Predicated region
    $region6: #{actor_forward.1} parent=1 // pred_check
      _
    $region7: #{actor_forward.1} parent=1 // pred_check_branch
      %22 = sbr.rel (0) target = $region9
    $region8: #{actor_forward.1} parent=1 // pred_region
      %s24 = ssub.s32 3072, 3072
      %25 = vsyncadd [#allocation6], %s24
      %s26 = sshll.u32 [#allocation5], 4
      %s27 = int_to_ptr.vmem [resolvable:$true] %s26
      %32 = dma.hbm_to_vmem [thread:$0]  %s1, 3072, %s27, [#allocation6], 64, 64, 4
    $region9: #{actor_forward.1} parent=1 // pred_fallthru
      _
    // Predicated region
    $region10: #{actor_forward.1} parent=1 // pred_check
      _
    $region11: #{actor_forward.1} parent=1 // pred_check_branch
      %34 = sbr.rel (0) target = $region13
    $region12: #{actor_forward.1} parent=1 // pred_region
      %s36 = ssub.s32 128, 128
      %37 = vsyncadd [#allocation6], %s36
      %s39 = sshll.u32 [#allocation7], 4
      %s40 = int_to_ptr.vmem [resolvable:$true] %s39
      %42 = dma.hbm_to_vmem [thread:$0]  %s2, 128, %s40, [#allocation6]
    $region13: #{actor_forward.1} parent=1 // pred_fallthru
      _
    // Predicated region
    $region14: #{actor_forward.1} parent=1 // pred_check
      _
    $region15: #{actor_forward.1} parent=1 // pred_check_branch
      %44 = sbr.rel (0) target = $region17
    $region16: #{actor_forward.1} parent=1 // pred_region
      %45 = dma.done [#allocation3], 128
    $region17: #{actor_forward.1} parent=1 // pred_fallthru
      _
    // Predicated region
    $region18: #{actor_forward.1} parent=1 // pred_check
      _
    $region19: #{actor_forward.1} parent=1 // pred_check_branch
      %47 = sbr.rel (0) target = $region21
    $region20: #{actor_forward.1} parent=1 // pred_region
      %48 = dma.done [#allocation6], 3072
    $region21: #{actor_forward.1} parent=1 // pred_fallthru
      _
    // Predicated region
    $region22: #{actor_forward.1} parent=1 // pred_check
      _
    $region23: #{actor_forward.1} parent=1 // pred_check_branch
      %50 = sbr.rel (0) target = $region25
    $region24: #{actor_forward.1} parent=1 // pred_region
      %51 = dma.done [#allocation6], 128
    $region25: #{actor_forward.1} parent=1 // pred_fallthru
      _
    %v53 = vld [vmem:[#allocation2] sm:$0xff]
    %vm54 = vcmask 211968
    %v55 = vsel %vm54, %v53, 0.0
    %v56 = vpack.c.bf16 %v55, %v55
    %v57 = vld [vmem:[#allocation5] sm:$0xf]
    %v58 = vld [vmem:[#allocation5 + $0x4] sm:$0xf]
    %v59 = vld [vmem:[#allocation5 + $0x8] sm:$0xf]
    %v60 = vld [vmem:[#allocation5 + $0xc] sm:$0xf]
    %v61 = vld [vmem:[#allocation5 + $0x10] sm:$0xf]
    %v62 = vld [vmem:[#allocation5 + $0x14] sm:$0xf]
    %v63 = vld [vmem:[#allocation5 + $0x18] sm:$0xf]
    %v64 = vld [vmem:[#allocation5 + $0x1c] sm:$0xf]
    %v65 = vld [vmem:[#allocation5 + $0x20] sm:$0xf]
    %v66 = vld [vmem:[#allocation5 + $0x24] sm:$0xf]
    %v67 = vld [vmem:[#allocation5 + $0x28] sm:$0xf]
    %v68 = vld [vmem:[#allocation5 + $0x2c] sm:$0xf]
    %v69 = vld [vmem:[#allocation5 + $0x30] sm:$0xf]
    %v70 = vld [vmem:[#allocation5 + $0x34] sm:$0xf]
    %v71 = vld [vmem:[#allocation5 + $0x38] sm:$0xf]
    %v72 = vld [vmem:[#allocation5 + $0x3c] sm:$0xf]
    %v73 = vld [vmem:[#allocation5 + $0x40] sm:$0xf]
    %v74 = vld [vmem:[#allocation5 + $0x44] sm:$0xf]
    %v75 = vld [vmem:[#allocation5 + $0x48] sm:$0xf]
    %v76 = vld [vmem:[#allocation5 + $0x4c] sm:$0xf]
    %v77 = vld [vmem:[#allocation5 + $0x50] sm:$0xf]
    %v78 = vld [vmem:[#allocation5 + $0x54] sm:$0xf]
    %v79 = vld [vmem:[#allocation5 + $0x58] sm:$0xf]
    %v80 = vld [vmem:[#allocation5 + $0x5c] sm:$0xf]
    %v81 = vld [vmem:[#allocation5 + $0x60] sm:$0xf]
    %v82 = vld [vmem:[#allocation5 + $0x64] sm:$0xf]
    %v83 = vld [vmem:[#allocation5 + $0x68] sm:$0xf]
    %v84 = vld [vmem:[#allocation5 + $0x6c] sm:$0xf]
    %v85 = vld [vmem:[#allocation5 + $0x70] sm:$0xf]
    %v86 = vld [vmem:[#allocation5 + $0x74] sm:$0xf]
    %v87 = vld [vmem:[#allocation5 + $0x78] sm:$0xf]
    %v88 = vld [vmem:[#allocation5 + $0x7c] sm:$0xf]
    %v89 = vld [vmem:[#allocation5 + $0x80] sm:$0xf]
    %v90 = vld [vmem:[#allocation5 + $0x84] sm:$0xf]
    %v91 = vld [vmem:[#allocation5 + $0x88] sm:$0xf]
    %v92 = vld [vmem:[#allocation5 + $0x8c] sm:$0xf]
    %v93 = vld [vmem:[#allocation5 + $0x90] sm:$0xf]
    %v94 = vld [vmem:[#allocation5 + $0x94] sm:$0xf]
    %v95 = vld [vmem:[#allocation5 + $0x98] sm:$0xf]
    %v96 = vld [vmem:[#allocation5 + $0x9c] sm:$0xf]
    %v97 = vld [vmem:[#allocation5 + $0xa0] sm:$0xf]
    %v98 = vld [vmem:[#allocation5 + $0xa4] sm:$0xf]
    %v99 = vld [vmem:[#allocation5 + $0xa8] sm:$0xf]
    %v100 = vld [vmem:[#allocation5 + $0xac] sm:$0xf]
    %v101 = vld [vmem:[#allocation5 + $0xb0] sm:$0xf]
    %v102 = vld [vmem:[#allocation5 + $0xb4] sm:$0xf]
    %v103 = vld [vmem:[#allocation5 + $0xb8] sm:$0xf]
    %v104 = vld [vmem:[#allocation5 + $0xbc] sm:$0xf]
    %v105 = vld [vmem:[#allocation7] sm:$0xff]
    %v106 = vlaneseq
    %v107 = vshrl.u32 %v106, 7
    %v108 = vsub.s32 0, %v107
    %v109 = vrot.slane %v105, %v108
    %v126 = vunpack.c.l.b16 %v57
    %v127 = vunpack.c.l.b16 %v58
    %v128 = vunpack.c.l.b16 %v59
    %v129 = vunpack.c.l.b16 %v60
    %v130 = vunpack.c.l.b16 %v61
    %v131 = vunpack.c.l.b16 %v62
    %v132 = vunpack.c.l.b16 %v63
    %v133 = vunpack.c.l.b16 %v64
    %v134 = vunpack.c.l.b16 %v65
    %v135 = vunpack.c.l.b16 %v66
    %v136 = vunpack.c.l.b16 %v67
    %v137 = vunpack.c.l.b16 %v68
    %v138 = vunpack.c.l.b16 %v69
    %v139 = vunpack.c.l.b16 %v70
    %v140 = vunpack.c.l.b16 %v71
    %v141 = vunpack.c.l.b16 %v72
    %v142 = vpack.c.b16 %v127, %v126
    %v143 = vpack.c.b16 %v129, %v128
    %v144 = vpack.c.b16 %v131, %v130
    %v145 = vpack.c.b16 %v133, %v132
    %v146 = vpack.c.b16 %v135, %v134
    %v147 = vpack.c.b16 %v137, %v136
    %v148 = vpack.c.b16 %v139, %v138
    %v149 = vpack.c.b16 %v141, %v140
    %158 = vmatprep.subr.bf16.mxu0 0
    %159 = vmatpush1.bf16.msra.mxu0 %v149
    %160 = vmatprep.subr.bf16.mxu0 0
    %161 = vmatpush1.bf16.msra.mxu0 %v148
    %162 = vmatprep.subr.bf16.mxu0 0
    %163 = vmatpush1.bf16.msra.mxu0 %v147
    %164 = vmatprep.subr.bf16.mxu0 0
    %165 = vmatpush1.bf16.msra.mxu0 %v146
    %166 = vmatprep.subr.bf16.mxu0 0
    %167 = vmatpush1.bf16.msra.mxu0 %v145
    %168 = vmatprep.subr.bf16.mxu0 0
    %169 = vmatpush1.bf16.msra.mxu0 %v144
    %170 = vmatprep.subr.bf16.mxu0 0
    %171 = vmatpush1.bf16.msra.mxu0 %v143
    %172 = vmatprep.subr.bf16.mxu0 0
    %173 = vmatpush1.bf16.msra.mxu0 %v142
    %174 = vmatprep.subr.bf16.mxu0 0
    %175 = vmatpush2.bf16.msra.mxu0 0
    %176 = vmatprep.subr.bf16.mxu0 0
    %177 = vmatpush2.bf16.msra.mxu0 0
    %178 = vmatprep.subr.bf16.mxu0 0
    %179 = vmatpush2.bf16.msra.mxu0 0
    %180 = vmatprep.subr.bf16.mxu0 0
    %181 = vmatpush2.bf16.msra.mxu0 0
    %182 = vmatprep.subr.bf16.mxu0 0
    %183 = vmatpush2.bf16.msra.mxu0 0
    %184 = vmatprep.subr.bf16.mxu0 0
    %185 = vmatpush2.bf16.msra.mxu0 0
    %186 = vmatprep.subr.bf16.mxu0 0
    %187 = vmatpush2.bf16.msra.mxu0 0
    %188 = vmatprep.subr.bf16.mxu0 0
    %189 = vmatpush2.bf16.msra.mxu0 0
    %190 = vmatprep.mubr.bf16.mxu0 0
    %191 = vmatmul.mubr.bf16.gmra.mxu0 %v56
    %v192 = vpop.f32.mrf.mxu0
    %v193 = vadd.f32 %v109, %v192
    %v194 = vpop.f32.mrf.mxu0
    %v195 = vpop.f32.mrf.mxu0
    %v196 = vpop.f32.mrf.mxu0
    %197 = vdwg.mxu0
    %v198 = vtanh.pop %v193
    %v199 = vpack.c.bf16 %v198, %v198
    %v200 = vlaneseq
    %v201 = vshrl.u32 %v200, 7
    %v202 = vsub.s32 1, %v201
    %v203 = vrot.slane %v105, %v202
    %v220 = vunpack.c.l.b16 %v73
    %v221 = vunpack.c.l.b16 %v74
    %v222 = vunpack.c.l.b16 %v75
    %v223 = vunpack.c.l.b16 %v76
    %v224 = vunpack.c.l.b16 %v77
    %v225 = vunpack.c.l.b16 %v78
    %v226 = vunpack.c.l.b16 %v79
    %v227 = vunpack.c.l.b16 %v80
    %v228 = vunpack.c.l.b16 %v81
    %v229 = vunpack.c.l.b16 %v82
    %v230 = vunpack.c.l.b16 %v83
    %v231 = vunpack.c.l.b16 %v84
    %v232 = vunpack.c.l.b16 %v85
    %v233 = vunpack.c.l.b16 %v86
    %v234 = vunpack.c.l.b16 %v87
    %v235 = vunpack.c.l.b16 %v88
    %v236 = vpack.c.b16 %v221, %v220
    %v237 = vpack.c.b16 %v223, %v222
    %v238 = vpack.c.b16 %v225, %v224
    %v239 = vpack.c.b16 %v227, %v226
    %v240 = vpack.c.b16 %v229, %v228
    %v241 = vpack.c.b16 %v231, %v230
    %v242 = vpack.c.b16 %v233, %v232
    %v243 = vpack.c.b16 %v235, %v234
    %252 = vmatprep.subr.bf16.mxu0 0
    %253 = vmatpush1.bf16.msra.mxu0 %v243
    %254 = vmatprep.subr.bf16.mxu0 0
    %255 = vmatpush1.bf16.msra.mxu0 %v242
    %256 = vmatprep.subr.bf16.mxu0 0
    %257 = vmatpush1.bf16.msra.mxu0 %v241
    %258 = vmatprep.subr.bf16.mxu0 0
    %259 = vmatpush1.bf16.msra.mxu0 %v240
    %260 = vmatprep.subr.bf16.mxu0 0
    %261 = vmatpush1.bf16.msra.mxu0 %v239
    %262 = vmatprep.subr.bf16.mxu0 0
    %263 = vmatpush1.bf16.msra.mxu0 %v238
    %264 = vmatprep.subr.bf16.mxu0 0
    %265 = vmatpush1.bf16.msra.mxu0 %v237
    %266 = vmatprep.subr.bf16.mxu0 0
    %267 = vmatpush1.bf16.msra.mxu0 %v236
    %268 = vmatprep.subr.bf16.mxu0 0
    %269 = vmatpush2.bf16.msra.mxu0 0
    %270 = vmatprep.subr.bf16.mxu0 0
    %271 = vmatpush2.bf16.msra.mxu0 0
    %272 = vmatprep.subr.bf16.mxu0 0
    %273 = vmatpush2.bf16.msra.mxu0 0
    %274 = vmatprep.subr.bf16.mxu0 0
    %275 = vmatpush2.bf16.msra.mxu0 0
    %276 = vmatprep.subr.bf16.mxu0 0
    %277 = vmatpush2.bf16.msra.mxu0 0
    %278 = vmatprep.subr.bf16.mxu0 0
    %279 = vmatpush2.bf16.msra.mxu0 0
    %280 = vmatprep.subr.bf16.mxu0 0
    %281 = vmatpush2.bf16.msra.mxu0 0
    %282 = vmatprep.subr.bf16.mxu0 0
    %283 = vmatpush2.bf16.msra.mxu0 0
    %284 = vmatprep.mubr.bf16.mxu0 0
    %285 = vmatmul.mubr.bf16.gmra.mxu0 %v199
    %v286 = vpop.f32.mrf.mxu0
    %v287 = vadd.f32 %v203, %v286
    %v288 = vpop.f32.mrf.mxu0
    %v289 = vpop.f32.mrf.mxu0
    %v290 = vpop.f32.mrf.mxu0
    %291 = vdwg.mxu0
    %v292 = vtanh.pop %v287
    %v293 = vpack.c.bf16 %v292, %v292
    %v294 = vlaneseq
    %v295 = vshrl.u32 %v294, 7
    %v296 = vsub.s32 2, %v295
    %v297 = vrot.slane %v105, %v296
    %v314 = vunpack.c.l.b16 %v89
    %v315 = vunpack.c.l.b16 %v90
    %v316 = vunpack.c.l.b16 %v91
    %v317 = vunpack.c.l.b16 %v92
    %v318 = vunpack.c.l.b16 %v93
    %v319 = vunpack.c.l.b16 %v94
    %v320 = vunpack.c.l.b16 %v95
    %v321 = vunpack.c.l.b16 %v96
    %v322 = vunpack.c.l.b16 %v97
    %v323 = vunpack.c.l.b16 %v98
    %v324 = vunpack.c.l.b16 %v99
    %v325 = vunpack.c.l.b16 %v100
    %v326 = vunpack.c.l.b16 %v101
    %v327 = vunpack.c.l.b16 %v102
    %v328 = vunpack.c.l.b16 %v103
    %v329 = vunpack.c.l.b16 %v104
    %v330 = vpack.c.b16 %v315, %v314
    %v331 = vpack.c.b16 %v317, %v316
    %v332 = vpack.c.b16 %v319, %v318
    %v333 = vpack.c.b16 %v321, %v320
    %v334 = vpack.c.b16 %v323, %v322
    %v335 = vpack.c.b16 %v325, %v324
    %v336 = vpack.c.b16 %v327, %v326
    %v337 = vpack.c.b16 %v329, %v328
    %346 = vmatprep.subr.bf16.mxu0 0
    %347 = vmatpush1.bf16.msra.mxu0 %v337
    %348 = vmatprep.subr.bf16.mxu0 0
    %349 = vmatpush1.bf16.msra.mxu0 %v336
    %350 = vmatprep.subr.bf16.mxu0 0
    %351 = vmatpush1.bf16.msra.mxu0 %v335
    %352 = vmatprep.subr.bf16.mxu0 0
    %353 = vmatpush1.bf16.msra.mxu0 %v334
    %354 = vmatprep.subr.bf16.mxu0 0
    %355 = vmatpush1.bf16.msra.mxu0 %v333
    %356 = vmatprep.subr.bf16.mxu0 0
    %357 = vmatpush1.bf16.msra.mxu0 %v332
    %358 = vmatprep.subr.bf16.mxu0 0
    %359 = vmatpush1.bf16.msra.mxu0 %v331
    %360 = vmatprep.subr.bf16.mxu0 0
    %361 = vmatpush1.bf16.msra.mxu0 %v330
    %362 = vmatprep.subr.bf16.mxu0 0
    %363 = vmatpush2.bf16.msra.mxu0 0
    %364 = vmatprep.subr.bf16.mxu0 0
    %365 = vmatpush2.bf16.msra.mxu0 0
    %366 = vmatprep.subr.bf16.mxu0 0
    %367 = vmatpush2.bf16.msra.mxu0 0
    %368 = vmatprep.subr.bf16.mxu0 0
    %369 = vmatpush2.bf16.msra.mxu0 0
    %370 = vmatprep.subr.bf16.mxu0 0
    %371 = vmatpush2.bf16.msra.mxu0 0
    %372 = vmatprep.subr.bf16.mxu0 0
    %373 = vmatpush2.bf16.msra.mxu0 0
    %374 = vmatprep.subr.bf16.mxu0 0
    %375 = vmatpush2.bf16.msra.mxu0 0
    %376 = vmatprep.subr.bf16.mxu0 0
    %377 = vmatpush2.bf16.msra.mxu0 0
    %378 = vmatprep.mubr.bf16.mxu0 0
    %379 = vmatmul.mubr.bf16.gmra.mxu0 %v293
    %v380 = vpop.f32.mrf.mxu0
    %v381 = vadd.f32 %v297, %v380
    %v382 = vpop.f32.mrf.mxu0
    %v383 = vpop.f32.mrf.mxu0
    %v384 = vpop.f32.mrf.mxu0
    %385 = vdwg.mxu0
    %v386 = vtanh.pop %v381
    %v387 = vpack.c.bf16 %v386, %v386
    %388 = vst [vmem:[#allocation8] sm:$0xf] %v387
    // Predicated region
    $region26: #{actor_forward.1} parent=1 // pred_check
      _
    $region27: #{actor_forward.1} parent=1 // pred_check_branch
      %390 = sbr.rel (0) target = $region29
    $region28: #{actor_forward.1} parent=1 // pred_region
      %s392 = ssub.s32 64, 64
      %393 = vsyncadd [#allocation4], %s392
      %s395 = sshll.u32 [#allocation8], 4
      %s396 = int_to_ptr.vmem [resolvable:$true] %s395
      %398 = dma.vmem_to_hbm [thread:$0]  %s396, 64, %s3, [#allocation4]
    $region29: #{actor_forward.1} parent=1 // pred_fallthru
      _
    // Predicated region
    $region30: #{actor_forward.1} parent=1 // pred_check
      _
    $region31: #{actor_forward.1} parent=1 // pred_check_branch
      %400 = sbr.rel (0) target = $region33
    $region32: #{actor_forward.1} parent=1 // pred_region
      %401 = dma.done [#allocation4], 64
    $region33: #{actor_forward.1} parent=1 // pred_fallthru
      _
    %402 = vsyncpa [#allocation3], 1
    %403 = vsyncpa [#allocation6], 1
    %404 = vsyncpa [#allocation4], 1

</llo_original>
